<compile_context>
chip_gen: v6e
topology: v6e:2x2x1
jax: 0.10.0
libtpu: 0.0.40
codegen_flags: <defaults>
</compile_context>

<pallas_src>
import functools

import jax
import jax.numpy as jnp
from jax.experimental import pallas as pl
from jax.experimental.pallas import tpu as pltpu


# ---------------------------------------------------------------------------
# Hardware / tiling plan
# ---------------------------------------------------------------------------
@functools.lru_cache(maxsize=None)
def _vmem_capacity_bytes():
    """Physical VMEM capacity of the local chip (conservative fallback)."""
    try:
        info = pltpu.get_tpu_info()
        for name in ("vmem_capacity_bytes", "vmem_bytes", "vmem_size_bytes"):
            v = getattr(info, name, None)
            if isinstance(v, int) and v > 0:
                return v
    except Exception:
        pass
    return 64 << 20  # v7x-sized VMEM: the most conservative assumption


def _plan(b, rows, r, itemsize, tiles_per_step):
    """Tile plan for a channel-major (B, rows, R) log-softmax stream.

    `tiles_per_step` = number of (rows x tl) tiles live per grid step
    (in-refs + out-refs).  Returns (tb, tl, grid, vmem_limit_bytes).
    """
    vmem_cap = _vmem_capacity_bytes()
    # Generation-aware per-step budget across all live tiles:
    #   128 MiB VMEM (v5e/v6e) -> 8 MiB; 64 MiB (v7x) -> 4 MiB.
    budget = max(1 << 20, min(8 << 20, vmem_cap // 16))
    rows_pad = ((rows + 7) // 8) * 8          # sublane padding in VMEM
    lane_full = max(128, ((r + 127) // 128) * 128)
    step_full = b * rows_pad * lane_full * itemsize * tiles_per_step
    if step_full <= budget:
        # Tiny head: a single grid step covering the whole array removes all
        # per-step pipeline overhead (~0.35 us / step).
        tb, tl, grid = b, r, (1, 1)
        step_bytes = step_full
    else:
        # Large head: stream lane tiles; grid (b, lane_tiles) keeps both v7x
        # TensorCores fed ("parallel" on both axes).
        tb = 1
        tl = max(128,
                 (budget // (rows_pad * itemsize * tiles_per_step)) // 128 * 128)
        tl = min(tl, lane_full)
        grid = (b, pl.cdiv(r, tl))
        step_bytes = rows_pad * tl * itemsize * tiles_per_step
        # NOTE: if r is not a multiple of tl, the last block reads padding;
        # writeback is masked (garbage lanes never reach HBM).
    # Double-buffered pipeline peak ~ 2 x step_bytes; generous headroom but
    # well inside physical VMEM on every generation.
    vmem_limit = int(min(vmem_cap // 2, max(32 << 20, 3 * step_bytes)))
    return tb, tl, grid, vmem_limit


# ---------------------------------------------------------------------------
# Pallas kernels
# ---------------------------------------------------------------------------
def _anchor_log_softmax_kernel(x0_ref, x1_ref, o0_ref, o1_ref):
    """Closed-form 2-way log-softmax over aligned class-0 / class-1 tiles.

    lse = x0 + softplus(x1 - x0);  out0 = -softplus(d);  out1 = d - softplus(d)
    Purely elementwise (VPU + EUP); no cross-lane/sublane work.
    """
    x0 = x0_ref[...].astype(jnp.float32)
    x1 = x1_ref[...].astype(jnp.float32)
    d = x1 - x0
    sp = jnp.maximum(d, 0.0) + jnp.log1p(jnp.exp(-jnp.abs(d)))  # stable softplus
    o0_ref[...] = (-sp).astype(o0_ref.dtype)
    o1_ref[...] = (d - sp).astype(o1_ref.dtype)


def _point_log_softmax_kernel(x_ref, o_ref):
    """C-way log-softmax over the (small) channel axis sitting on sublanes.

    The cross-sublane max/sum maps to the XLU slot; the rest is VPU/EUP.
    """
    x = x_ref[...].astype(jnp.float32)
    m = jnp.max(x, axis=-2, keepdims=True)
    xs = x - m
    den = jnp.sum(jnp.exp(xs), axis=-2, keepdims=True)
    o_ref[...] = (xs - jnp.log(den)).astype(o_ref.dtype)


# ---------------------------------------------------------------------------
# pallas_call wrappers
# ---------------------------------------------------------------------------
@jax.jit
def _anchor_log_softmax_cm(x4):
    """x4: (B, 2, K, R) channel-major.  Returns (out0, out1), each (B, K, R)
    lane-dense: log_softmax over the 2-way class axis, per class plane."""
    b, two, k, r = x4.shape
    assert two == 2
    itemsize = jnp.dtype(x4.dtype).itemsize
    tb, tl, grid, vmem_limit = _plan(b, k, r, itemsize, tiles_per_step=4)
    elems = b * 2 * k * r
    out_sds = jax.ShapeDtypeStruct((b, k, r), x4.dtype)
    return pl.pallas_call(
        _anchor_log_softmax_kernel,
        out_shape=(out_sds, out_sds),
        grid_spec=pltpu.PrefetchScalarGridSpec(
            num_scalar_prefetch=0,
            grid=grid,
            in_specs=[
                # Two aligned class-plane views of the SAME input array.
                pl.BlockSpec((tb, None, k, tl), lambda bi, ri: (bi, 0, 0, ri)),
                pl.BlockSpec((tb, None, k, tl), lambda bi, ri: (bi, 1, 0, ri)),
            ],
            out_specs=[
                pl.BlockSpec((tb, k, tl), lambda bi, ri: (bi, 0, ri)),
                pl.BlockSpec((tb, k, tl), lambda bi, ri: (bi, 0, ri)),
            ]),
        compiler_params=pltpu.CompilerParams(
            dimension_semantics=("parallel", "parallel"),
            vmem_limit_bytes=vmem_limit),
        cost_estimate=pl.CostEstimate(
            flops=6 * elems,
            transcendentals=elems,
            bytes_accessed=2 * elems * itemsize),
    )(x4, x4)


@jax.jit
def _point_log_softmax_cm(x_cm):
    """x_cm: (B, A, R) channel-major.  log_softmax over axis 1 (channels)."""
    b, a, r = x_cm.shape
    itemsize = jnp.dtype(x_cm.dtype).itemsize
    tb, tl, grid, vmem_limit = _plan(b, a, r, itemsize, tiles_per_step=2)
    elems = b * a * r
    return pl.pallas_call(
        _point_log_softmax_kernel,
        out_shape=jax.ShapeDtypeStruct((b, a, r), x_cm.dtype),
        grid_spec=pltpu.PrefetchScalarGridSpec(
            num_scalar_prefetch=0,
            grid=grid,
            in_specs=[pl.BlockSpec((tb, a, tl), lambda bi, ri: (bi, 0, ri))],
            out_specs=pl.BlockSpec((tb, a, tl), lambda bi, ri: (bi, 0, ri))),
        compiler_params=pltpu.CompilerParams(
            dimension_semantics=("parallel", "parallel"),
            vmem_limit_bytes=vmem_limit),
        cost_estimate=pl.CostEstimate(
            flops=6 * elems,
            transcendentals=elems,
            bytes_accessed=2 * elems * itemsize),
    )(x_cm)


# ---------------------------------------------------------------------------
# Module wrapper mirroring BaseModelBuilder's forward-path semantics.
# ---------------------------------------------------------------------------
class Cfg:
    """Minimal stand-in for the pysot config used by BaseModelBuilder."""

    def __init__(self, base="anchor", mode="original", amp=False):
        self.BASE = base
        self.MODE = mode
        self.AMP = amp


class BaseModelBuilderPallas:
    """JAX/Pallas re-implementation of pysot BaseModelBuilder's concrete math."""

    def __init__(self, cfg):
        self.T = 0.4
        self.ti = 0.3
        self.ts = 0.3
        self.train_epoch = 0
        self.update_settings = None
        self.weights = None
        self.logger = None
        self.validate = False
        self.cfg = cfg
        # TODO(synk): get_backbone / get_neck registries are external to this
        # module; no parameters exist here for the log_softmax hot path.

    # --- forward dispatch (mirrors the PyTorch control flow) ---------------
    # TODO(synk): torch.cuda.amp.autocast has no JAX equivalent here; the
    # non-AMP dispatch branch is implemented (same branch targets).
    def forward(self, data):
        if isinstance(data, dict):
            if "trial" in self.cfg.MODE:
                return self.forward_trial(data)
            elif self.cfg.MODE == "teacher":
                return self.forward_teacher(data)
            elif self.cfg.MODE == "student":
                return self.forward_student(data)
            else:
                return self.forward_original(data)
        else:
            return self.forward_param(data)

    def forward_original(self, data):
        raise NotImplementedError

    def forward_trial(self, data):
        raise NotImplementedError

    def forward_teacher(self, data):
        return None

    def forward_student(self, data):
        return None

    def forward_param(self, data):
        return None

    def get_head_parameters(self):
        return []

    def track(self, x):
        raise NotImplementedError

    # --- the concrete compute: log_softmax head ----------------------------
    def log_softmax(self, cls, return_pred=False):
        # cls: NCHW, shape (b, a2, h, w), matching torch semantics.
        b, a2, h, w = cls.shape
        r = h * w
        if self.cfg.BASE == "anchor":
            if a2 % 2 != 0:
                raise ValueError("anchor BASE requires an even channel count")
            k = a2 // 2
            x4 = cls.reshape(b, 2, k, r)  # free channel-major view, no copy
            out0, out1 = _anchor_log_softmax_cm(x4)
            # Deferred interleave to honour torch's (b, k, h, w, 2) contract.
            # The 2-wide last axis is lane-sparse; if the downstream loss can
            # consume the channel-major (b, k, h*w) pair, use out0/out1 directly.
            lsm = jnp.stack([out0.reshape(b, k, h, w),
                             out1.reshape(b, k, h, w)], axis=-1)
            if not return_pred:
                return lsm
            pred = cls.reshape(b, 2, k, h, w).transpose(0, 2, 3, 4, 1)
            return lsm, pred
        elif self.cfg.BASE == "point":
            out_cm = _point_log_softmax_cm(cls.reshape(b, a2, r))
            lsm = out_cm.reshape(b, a2, h, w).transpose(0, 2, 3, 1)
            if not return_pred:
                return lsm
            pred = cls.transpose(0, 2, 3, 1)
            return lsm, pred
        else:
            raise ValueError(f"unknown BASE {self.cfg.BASE}")


if __name__ == "__main__":
    key = jax.random.PRNGKey(0)
    k1, k2 = jax.random.split(key)

    # --- 'anchor' mode: b=2, a2=10 (5 anchors x {bg,fg}), 16x16 spatial ----
    cfg_anchor = Cfg(base="anchor")
    model_a = BaseModelBuilderPallas(cfg_anchor)
    cls_anchor = jax.random.normal(k1, (2, 10, 16, 16), dtype=jnp.float32)
    out_a, pred_a = model_a.log_softmax(cls_anchor, return_pred=True)
    out_a = jax.block_until_ready(out_a)

    ref_perm = cls_anchor.reshape(2, 2, 5, 16, 16).transpose(0, 2, 3, 4, 1)
    ref_a = jax.nn.log_softmax(ref_perm, axis=-1)
    assert out_a.shape == (2, 5, 16, 16, 2)
    assert jnp.max(jnp.abs(out_a - ref_a)) < 1e-5
    assert jnp.max(jnp.abs(pred_a - ref_perm)) == 0.0

    # --- 'point' mode: b=2, c=4 classes, 16x16 spatial ---------------------
    cfg_point = Cfg(base="point")
    model_p = BaseModelBuilderPallas(cfg_point)
    cls_point = jax.random.normal(k2, (2, 4, 16, 16), dtype=jnp.float32)
    out_p = jax.block_until_ready(model_p.log_softmax(cls_point))
    ref_p = jax.nn.log_softmax(cls_point.transpose(0, 2, 3, 1), axis=-1)
    assert out_p.shape == (2, 16, 16, 4)
    assert jnp.max(jnp.abs(out_p - ref_p)) < 1e-5

    # forward() dispatch sanity (teacher/student paths return None, as in torch)
    assert model_a.forward(1.0) is None  # forward_param
    cfg_t = Cfg(base="anchor", mode="teacher")
    assert BaseModelBuilderPallas(cfg_t).forward({"x": cls_anchor}) is None

    print("KERNEL_OK")
</pallas_src>

<mosaic_0001>
module attributes {stable_mosaic.version = 11 : i64} {
  func.func @_anchor_log_softmax_kernel(%arg0: i32, %arg1: i32, %arg2: memref<2x1x5x256xf32, #tpu.memory_space<vmem>>, %arg3: memref<2x1x5x256xf32, #tpu.memory_space<vmem>>, %arg4: memref<2x5x256xf32, #tpu.memory_space<vmem>>, %arg5: memref<2x5x256xf32, #tpu.memory_space<vmem>>) attributes {dimension_semantics = [#tpu.dimension_semantics<parallel>, #tpu.dimension_semantics<parallel>], iteration_bounds = array<i64: 1, 1>, scalar_prefetch = 0 : i64, scratch_operands = 0 : i64, tpu.core_type = #tpu.core_type<tc>, window_params = [{transform_indices = @transform_0, window_bounds = array<i64: 2, 1, 5, 256>}, {transform_indices = @transform_1, window_bounds = array<i64: 2, 1, 5, 256>}, {transform_indices = @transform_2, window_bounds = array<i64: 2, 5, 256>}, {transform_indices = @transform_3, window_bounds = array<i64: 2, 5, 256>}]} {
    %c0 = arith.constant 0 : index
    %c0_0 = arith.constant 0 : index
    %c0_1 = arith.constant 0 : index
    %c0_2 = arith.constant 0 : index
    %0 = vector.load %arg2[%c0, %c0_0, %c0_1, %c0_2] : memref<2x1x5x256xf32, #tpu.memory_space<vmem>>, vector<2x1x5x256xf32>
    %1 = vector.shape_cast %0 : vector<2x1x5x256xf32> to vector<2x5x256xf32>
    %c0_3 = arith.constant 0 : index
    %c0_4 = arith.constant 0 : index
    %c0_5 = arith.constant 0 : index
    %c0_6 = arith.constant 0 : index
    %2 = vector.load %arg3[%c0_3, %c0_4, %c0_5, %c0_6] : memref<2x1x5x256xf32, #tpu.memory_space<vmem>>, vector<2x1x5x256xf32>
    %3 = vector.shape_cast %2 : vector<2x1x5x256xf32> to vector<2x5x256xf32>
    %4 = arith.subf %3, %1 : vector<2x5x256xf32>
    %cst = arith.constant 0.000000e+00 : f32
    %5 = vector.broadcast %cst : f32 to vector<2x5x256xf32>
    %6 = arith.maximumf %4, %5 : vector<2x5x256xf32>
    %7 = math.absf %4 : vector<2x5x256xf32>
    %cst_7 = arith.constant 0.000000e+00 : f32
    %8 = vector.broadcast %cst_7 : f32 to vector<2x5x256xf32>
    %9 = arith.subf %8, %7 : vector<2x5x256xf32>
    %10 = math.exp %9 : vector<2x5x256xf32>
    %11 = math.log1p %10 : vector<2x5x256xf32>
    %12 = arith.addf %6, %11 : vector<2x5x256xf32>
    %cst_8 = arith.constant 0.000000e+00 : f32
    %13 = vector.broadcast %cst_8 : f32 to vector<2x5x256xf32>
    %14 = arith.subf %13, %12 : vector<2x5x256xf32>
    %c0_9 = arith.constant 0 : index
    %c0_10 = arith.constant 0 : index
    %c0_11 = arith.constant 0 : index
    %15 = vector.load %arg4[%c0_9, %c0_10, %c0_11] : memref<2x5x256xf32, #tpu.memory_space<vmem>>, vector<2x5x256xf32>
    tpu.vector_store %arg4[%c0_9, %c0_10, %c0_11], %14 {strides = array<i32>} : memref<2x5x256xf32, #tpu.memory_space<vmem>>, vector<2x5x256xf32>,
    %16 = arith.subf %4, %12 : vector<2x5x256xf32>
    %c0_12 = arith.constant 0 : index
    %c0_13 = arith.constant 0 : index
    %c0_14 = arith.constant 0 : index
    %17 = vector.load %arg5[%c0_12, %c0_13, %c0_14] : memref<2x5x256xf32, #tpu.memory_space<vmem>>, vector<2x5x256xf32>
    tpu.vector_store %arg5[%c0_12, %c0_13, %c0_14], %16 {strides = array<i32>} : memref<2x5x256xf32, #tpu.memory_space<vmem>>, vector<2x5x256xf32>,
    return
  }
  func.func @transform_0(%arg0: i32, %arg1: i32) -> (i32, i32, i32, i32) {
    %c0_i32 = arith.constant 0 : i32
    %c0_i32_0 = arith.constant 0 : i32
    %c0_i32_1 = arith.constant 0 : i32
    return %arg0, %c0_i32, %c0_i32_0, %arg1 : i32, i32, i32, i32
  }
  func.func @transform_1(%arg0: i32, %arg1: i32) -> (i32, i32, i32, i32) {
    %c1_i32 = arith.constant 1 : i32
    %c0_i32 = arith.constant 0 : i32
    %c0_i32_0 = arith.constant 0 : i32
    return %arg0, %c1_i32, %c0_i32, %arg1 : i32, i32, i32, i32
  }
  func.func @transform_2(%arg0: i32, %arg1: i32) -> (i32, i32, i32) {
    %c0_i32 = arith.constant 0 : i32
    %c0_i32_0 = arith.constant 0 : i32
    return %arg0, %c0_i32, %arg1 : i32, i32, i32
  }
  func.func @transform_3(%arg0: i32, %arg1: i32) -> (i32, i32, i32) {
    %c0_i32 = arith.constant 0 : i32
    %c0_i32_0 = arith.constant 0 : i32
    return %arg0, %c0_i32, %arg1 : i32, i32, i32
  }
}

</mosaic_0001>

<llo_original>
// kernel: _anchor_log_softmax_cm.1
$region0: #{_anchor_log_softmax_cm.1}
  #allocation0 [shape = 'u32[]', space=smem, size = 0x4, offset = 0x4, fixed_abs, tag = 'smem constant byte address 0x4 - core index']
  #allocation1 [shape = 'u32[144,128]{1,0:T(1,128)}', space=vmem, size = 0x12000, scoped, tag = 'internal scratch']
  %s0 = inlined_call_operand.vmem [shape: f32[2,2,5,256], index: 0, kind: input, shape index: {}, may-alias: {0,1}]
  %s1 = inlined_call_operand.vmem [shape: f32[2,2,5,256], index: 1, kind: input, shape index: {}, may-alias: {0,1}]
  %s2 = inlined_call_operand.vmem [shape: f32[2,5,256], index: 2, kind: output, shape index: {0}]
  %s3 = inlined_call_operand.vmem [shape: f32[2,5,256], index: 3, kind: output, shape index: {1}]
  %4 = xla_tuple %s2, %s3
  %s5 = sld [smem:[#allocation0]]
  $region72: #{_anchor_log_softmax_cm.1} parent=0
    _
  %s7 = ssub.s32 1, %s5
  %s8 = scalar_select 0, %s7, %s5
  $region1: #{_anchor_log_softmax_cm.1} parent=0
    #allocation2 [shape = 'u8[16384]{0}', space=vmem, size = 0x4000, scoped, tag = 'input window, operand 0, single buffered']
    #allocation3 [shape = 'u8[16384]{0}', space=vmem, size = 0x4000, scoped, tag = 'input window, operand 1, single buffered']
    // Predicated region
    $region2: #{_anchor_log_softmax_cm.1} parent=1 // pred_check
      _
    $region3: #{_anchor_log_softmax_cm.1} parent=1 // pred_check_branch
      %10 = sbr.rel (0) target = $region5
    $region4: #{_anchor_log_softmax_cm.1} parent=1 // pred_region
      // Predicated region
      $region6: #{_anchor_log_softmax_cm.1} parent=4 // pred_check
        _
      $region7: #{_anchor_log_softmax_cm.1} parent=4 // pred_check_branch
        %12 = sbr.rel (0) target = $region9
      $region8: #{_anchor_log_softmax_cm.1} parent=4 // pred_region
        // Predicated region
        $region10: #{_anchor_log_softmax_cm.1} parent=8 // pred_check
          _
        $region11: #{_anchor_log_softmax_cm.1} parent=8 // pred_check_branch
          %14 = sbr.rel (0) target = $region13
        $region12: #{_anchor_log_softmax_cm.1} parent=8 // pred_region
          loop: start=0, step=1, limit=1
          $region14: #{_anchor_log_softmax_cm.1} parent=12 // loop_pre_header
            _
          $region15: #{_anchor_log_softmax_cm.1} parent=12 // loop_header
            %s16 = sphi 0, %s20
            %p17 = scmp.ge.s32.totalorder %s16, 1
            %s21 = sphi %s0, %s0
            %s22 = sphi [#allocation2], [#allocation2]
          $region16: #{_anchor_log_softmax_cm.1} parent=12 // loop_header_branch
            %19 = sbr.rel (%p17) target = $region20
          $region17: #{_anchor_log_softmax_cm.1} parent=12 // loop_body
            %v23 = vld [vmem:[%s21] sm:$0xff]
            %24 = vst [vmem:[%s22] sm:$0xff] %v23
            %v25 = vld [vmem:[%s21 + $0x8] sm:$0xff]
            %26 = vst [vmem:[%s22 + $0x8] sm:$0xff] %v25
            %v27 = vld [vmem:[%s21 + $0x20] sm:$0xff]
            %28 = vst [vmem:[%s22 + $0x10] sm:$0xff] %v27
            %v29 = vld [vmem:[%s21 + $0x28] sm:$0xff]
            %30 = vst [vmem:[%s22 + $0x18] sm:$0xff] %v29
          $region18: #{_anchor_log_softmax_cm.1} parent=12 // loop_footer
            %s20 = sadd.s32 1, %s16
          $region19: #{_anchor_log_softmax_cm.1} parent=12 // loop_footer_branch
            %15 = sbr.rel target = $region15
          $region20: #{_anchor_log_softmax_cm.1} parent=12 // loop_exit
            _
        $region13: #{_anchor_log_softmax_cm.1} parent=8 // pred_fallthru
          _
        // Predicated region
        $region21: #{_anchor_log_softmax_cm.1} parent=8 // pred_check
          _
        $region22: #{_anchor_log_softmax_cm.1} parent=8 // pred_check_branch
          %32 = sbr.rel target = $region24
        $region23: #{_anchor_log_softmax_cm.1} parent=8 // pred_region
          _
        $region24: #{_anchor_log_softmax_cm.1} parent=8 // pred_fallthru
          _
      $region9: #{_anchor_log_softmax_cm.1} parent=4 // pred_fallthru
        _
      %33 = vnop
    $region5: #{_anchor_log_softmax_cm.1} parent=1 // pred_fallthru
      _
    // Predicated region
    $region25: #{_anchor_log_softmax_cm.1} parent=1 // pred_check
      _
    $region26: #{_anchor_log_softmax_cm.1} parent=1 // pred_check_branch
      %35 = sbr.rel (0) target = $region28
    $region27: #{_anchor_log_softmax_cm.1} parent=1 // pred_region
      %s36 = scalar_lea.vmem %s1, 16
      // Predicated region
      $region29: #{_anchor_log_softmax_cm.1} parent=27 // pred_check
        _
      $region30: #{_anchor_log_softmax_cm.1} parent=27 // pred_check_branch
        %38 = sbr.rel (0) target = $region32
      $region31: #{_anchor_log_softmax_cm.1} parent=27 // pred_region
        // Predicated region
        $region33: #{_anchor_log_softmax_cm.1} parent=31 // pred_check
          _
        $region34: #{_anchor_log_softmax_cm.1} parent=31 // pred_check_branch
          %40 = sbr.rel (0) target = $region36
        $region35: #{_anchor_log_softmax_cm.1} parent=31 // pred_region
          loop: start=0, step=1, limit=1
          $region37: #{_anchor_log_softmax_cm.1} parent=35 // loop_pre_header
            _
          $region38: #{_anchor_log_softmax_cm.1} parent=35 // loop_header
            %s42 = sphi 0, %s46
            %p43 = scmp.ge.s32.totalorder %s42, 1
            %s47 = sphi %s36, %s36
            %s48 = sphi [#allocation3], [#allocation3]
          $region39: #{_anchor_log_softmax_cm.1} parent=35 // loop_header_branch
            %45 = sbr.rel (%p43) target = $region43
          $region40: #{_anchor_log_softmax_cm.1} parent=35 // loop_body
            %v49 = vld [vmem:[%s47] sm:$0xff]
            %50 = vst [vmem:[%s48] sm:$0xff] %v49
            %v51 = vld [vmem:[%s47 + $0x8] sm:$0xff]
            %52 = vst [vmem:[%s48 + $0x8] sm:$0xff] %v51
            %v53 = vld [vmem:[%s47 + $0x20] sm:$0xff]
            %54 = vst [vmem:[%s48 + $0x10] sm:$0xff] %v53
            %v55 = vld [vmem:[%s47 + $0x28] sm:$0xff]
            %56 = vst [vmem:[%s48 + $0x18] sm:$0xff] %v55
          $region41: #{_anchor_log_softmax_cm.1} parent=35 // loop_footer
            %s46 = sadd.s32 1, %s42
          $region42: #{_anchor_log_softmax_cm.1} parent=35 // loop_footer_branch
            %41 = sbr.rel target = $region38
          $region43: #{_anchor_log_softmax_cm.1} parent=35 // loop_exit
            _
        $region36: #{_anchor_log_softmax_cm.1} parent=31 // pred_fallthru
          _
        // Predicated region
        $region44: #{_anchor_log_softmax_cm.1} parent=31 // pred_check
          _
        $region45: #{_anchor_log_softmax_cm.1} parent=31 // pred_check_branch
          %58 = sbr.rel target = $region47
        $region46: #{_anchor_log_softmax_cm.1} parent=31 // pred_region
          _
        $region47: #{_anchor_log_softmax_cm.1} parent=31 // pred_fallthru
          _
      $region32: #{_anchor_log_softmax_cm.1} parent=27 // pred_fallthru
        _
      %59 = vnop
    $region28: #{_anchor_log_softmax_cm.1} parent=1 // pred_fallthru
      _
    // Predicated region
    $region48: #{_anchor_log_softmax_cm.1} parent=1 // pred_check
      _
    $region49: #{_anchor_log_softmax_cm.1} parent=1 // pred_check_branch
      %61 = sbr.rel (0) target = $region51
    $region50: #{_anchor_log_softmax_cm.1} parent=1 // pred_region
      _
    $region51: #{_anchor_log_softmax_cm.1} parent=1 // pred_fallthru
      _
    // Predicated region
    $region52: #{_anchor_log_softmax_cm.1} parent=1 // pred_check
      _
    $region53: #{_anchor_log_softmax_cm.1} parent=1 // pred_check_branch
      %63 = sbr.rel (0) target = $region55
    $region54: #{_anchor_log_softmax_cm.1} parent=1 // pred_region
      _
    $region55: #{_anchor_log_softmax_cm.1} parent=1 // pred_fallthru
      _
    %v64 = vld [vmem:[#allocation2] sm:$0x1f]
    %v65 = vld [vmem:[#allocation2 + $0x8] sm:$0x1f]
    %v66 = vld [vmem:[#allocation2 + $0x10] sm:$0x1f]
    %v67 = vld [vmem:[#allocation2 + $0x18] sm:$0x1f]
    %v68 = vld [vmem:[#allocation3] sm:$0x1f]
    %v69 = vld [vmem:[#allocation3 + $0x8] sm:$0x1f]
    %v70 = vld [vmem:[#allocation3 + $0x10] sm:$0x1f]
    %v71 = vld [vmem:[#allocation3 + $0x18] sm:$0x1f]
    %v72 = vsub.f32 %v68, %v64
    %v73 = vsub.f32 %v69, %v65
    %v74 = vsub.f32 %v70, %v66
    %v75 = vsub.f32 %v71, %v67
    %v76 = vmax.f32 %v72, 0.0
    %v77 = vmax.f32 %v73, 0.0
    %v78 = vmax.f32 %v74, 0.0
    %v79 = vmax.f32 %v75, 0.0
    %v80 = vand.u32 2147483647, %v72
    %v81 = vand.u32 2147483647, %v73
    %v82 = vand.u32 2147483647, %v74
    %v83 = vand.u32 2147483647, %v75
    %v84 = vsub.f32 0.0, %v80
    %v85 = vsub.f32 0.0, %v81
    %v86 = vsub.f32 0.0, %v82
    %v87 = vsub.f32 0.0, %v83
    %v88 = vmul.f32 %v84, 1.442695
    %v89 = vpow.pop %v88
    %v90 = vmul.f32 %v85, 1.442695
    %v91 = vpow.pop %v90
    %v92 = vmul.f32 %v86, 1.442695
    %v93 = vpow.pop %v92
    %v94 = vmul.f32 %v87, 1.442695
    %v95 = vpow.pop %v94
    %v96 = vadd.f32 %v89, 1.0
    %v97 = vlog2.pop %v96
    %v98 = vmul.f32 %v97, 0.6931472
    %v99 = vmul.f32 -0.5, %v89
    %v100 = vadd.f32 %v99, 1.0
    %v101 = vmul.f32 %v100, %v89
    %v102 = vand.u32 2147483647, %v89
    %vm103 = vcmp.lt.f32.partialorder %v102, 0.0004427343
    %v104 = vsel %vm103, %v101, %v98
    %v105 = vadd.f32 %v91, 1.0
    %v106 = vlog2.pop %v105
    %v107 = vmul.f32 %v106, 0.6931472
    %v108 = vmul.f32 -0.5, %v91
    %v109 = vadd.f32 %v108, 1.0
    %v110 = vmul.f32 %v109, %v91
    %v111 = vand.u32 2147483647, %v91
    %vm112 = vcmp.lt.f32.partialorder %v111, 0.0004427343
    %v113 = vsel %vm112, %v110, %v107
    %v114 = vadd.f32 %v93, 1.0
    %v115 = vlog2.pop %v114
    %v116 = vmul.f32 %v115, 0.6931472
    %v117 = vmul.f32 -0.5, %v93
    %v118 = vadd.f32 %v117, 1.0
    %v119 = vmul.f32 %v118, %v93
    %v120 = vand.u32 2147483647, %v93
    %vm121 = vcmp.lt.f32.partialorder %v120, 0.0004427343
    %v122 = vsel %vm121, %v119, %v116
    %v123 = vadd.f32 %v95, 1.0
    %v124 = vlog2.pop %v123
    %v125 = vmul.f32 %v124, 0.6931472
    %v126 = vmul.f32 -0.5, %v95
    %v127 = vadd.f32 %v126, 1.0
    %v128 = vmul.f32 %v127, %v95
    %v129 = vand.u32 2147483647, %v95
    %vm130 = vcmp.lt.f32.partialorder %v129, 0.0004427343
    %v131 = vsel %vm130, %v128, %v125
    %v132 = vadd.f32 %v76, %v104
    %v133 = vadd.f32 %v77, %v113
    %v134 = vadd.f32 %v78, %v122
    %v135 = vadd.f32 %v79, %v131
    %v136 = vsub.f32 0.0, %v132
    %v137 = vsub.f32 0.0, %v133
    %v138 = vsub.f32 0.0, %v134
    %v139 = vsub.f32 0.0, %v135
    %140 = vst [vmem:[%s2] sm:$0x1f] %v136
    %141 = vst [vmem:[%s2 + $0x8] sm:$0x1f] %v137
    %142 = vst [vmem:[%s2 + $0x10] sm:$0x1f] %v138
    %143 = vst [vmem:[%s2 + $0x18] sm:$0x1f] %v139
    %v144 = vsub.f32 %v72, %v132
    %v145 = vsub.f32 %v73, %v133
    %v146 = vsub.f32 %v74, %v134
    %v147 = vsub.f32 %v75, %v135
    %148 = vst [vmem:[%s3] sm:$0x1f] %v144
    %149 = vst [vmem:[%s3 + $0x8] sm:$0x1f] %v145
    %150 = vst [vmem:[%s3 + $0x10] sm:$0x1f] %v146
    %151 = vst [vmem:[%s3 + $0x18] sm:$0x1f] %v147
    // Predicated region
    $region56: #{_anchor_log_softmax_cm.1} parent=1 // pred_check
      _
    $region57: #{_anchor_log_softmax_cm.1} parent=1 // pred_check_branch
      %153 = sbr.rel (0) target = $region59
    $region58: #{_anchor_log_softmax_cm.1} parent=1 // pred_region
      _
    $region59: #{_anchor_log_softmax_cm.1} parent=1 // pred_fallthru
      _
    // Predicated region
    $region60: #{_anchor_log_softmax_cm.1} parent=1 // pred_check
      _
    $region61: #{_anchor_log_softmax_cm.1} parent=1 // pred_check_branch
      %155 = sbr.rel (0) target = $region63
    $region62: #{_anchor_log_softmax_cm.1} parent=1 // pred_region
      _
    $region63: #{_anchor_log_softmax_cm.1} parent=1 // pred_fallthru
      _
    // Predicated region
    $region64: #{_anchor_log_softmax_cm.1} parent=1 // pred_check
      _
    $region65: #{_anchor_log_softmax_cm.1} parent=1 // pred_check_branch
      %157 = sbr.rel (0) target = $region67
    $region66: #{_anchor_log_softmax_cm.1} parent=1 // pred_region
      _
    $region67: #{_anchor_log_softmax_cm.1} parent=1 // pred_fallthru
      _
    // Predicated region
    $region68: #{_anchor_log_softmax_cm.1} parent=1 // pred_check
      _
    $region69: #{_anchor_log_softmax_cm.1} parent=1 // pred_check_branch
      %159 = sbr.rel (0) target = $region71
    $region70: #{_anchor_log_softmax_cm.1} parent=1 // pred_region
      _
    $region71: #{_anchor_log_softmax_cm.1} parent=1 // pred_fallthru
      _

</llo_original>
